<compile_context>
chip_gen: v7x
topology: tpu7x:2x2x1
jax: 0.10.0
libtpu: 0.0.40
codegen_flags: <defaults>
</compile_context>

<pallas_src>
import functools

import jax
import jax.numpy as jnp
from jax import lax
from jax.experimental import pallas as pl
from jax.experimental.pallas import tpu as pltpu

# Raise the scoped VMEM limit above the 16/32 MiB defaults but stay under
# v7x's 64 MiB physical VMEM; size double-buffered blocks against a
# conservative buffer budget.
_VMEM_LIMIT_BYTES = 48 * 1024 * 1024
_BUF_BUDGET_BYTES = 32 * 1024 * 1024
_MAX_BLOCK_ROWS = 2048


def _pick_block_rows(n_rows, bytes_per_row_all_buffers):
    """Largest row tile (multiple of 32, capped) whose buffers fit the budget."""
    t = _BUF_BUDGET_BYTES // max(int(bytes_per_row_all_buffers), 1)
    t = max(32, (t // 32) * 32)          # multiple of 32: legal for f32/bf16/int8
    t = min(t, _MAX_BLOCK_ROWS)
    if n_rows <= t:
        return n_rows, 1                 # single full block (block == array is always legal)
    return t, pl.cdiv(n_rows, t)


# ---------------------------------------------------------------------------
# Kernel 1: masked reduction -> per-feature sum(x*mask) and scalar sum(mask)
# ---------------------------------------------------------------------------
def _sum_kernel(x_ref, m_ref, sum_ref, num_ref, *, n_rows, block_rows):
    i = pl.program_id(0)

    @pl.when(i == 0)
    def _():
        sum_ref[...] = jnp.zeros_like(sum_ref)
        num_ref[...] = jnp.zeros_like(num_ref)

    # The grid uses cdiv, so the last block may extend past n_rows; those rows
    # read unspecified data and must be forced to zero before accumulating.
    row = lax.broadcasted_iota(jnp.int32, (block_rows, 1), 0) + i * block_rows
    valid = row < n_rows
    data = jnp.where(valid, x_ref[...] * m_ref[...], 0.0)      # (rows, F)
    m = jnp.where(valid, m_ref[...], 0.0)                      # (rows, 1)
    sum_ref[...] += jnp.sum(data, axis=0, keepdims=True)
    num_ref[...] += jnp.sum(m, axis=0, keepdims=True)


def _masked_sum(x2d, m2d):
    n, f = x2d.shape
    block_rows, grid = _pick_block_rows(n, (f + 1) * 4 * 2)    # x + mask, double-buffered
    kernel = functools.partial(_sum_kernel, n_rows=n, block_rows=block_rows)
    return pl.pallas_call(
        kernel,
        out_shape=(jax.ShapeDtypeStruct((1, f), jnp.float32),
                   jax.ShapeDtypeStruct((1, 1), jnp.float32)),
        grid_spec=pltpu.PrefetchScalarGridSpec(
            num_scalar_prefetch=0,
            grid=(grid,),
            in_specs=[pl.BlockSpec((block_rows, f), lambda i: (i, 0)),
                      pl.BlockSpec((block_rows, 1), lambda i: (i, 0))],
            out_specs=[pl.BlockSpec((1, f), lambda i: (0, 0)),
                       pl.BlockSpec((1, 1), lambda i: (0, 0))]),
        compiler_params=pltpu.CompilerParams(
            dimension_semantics=("arbitrary",),
            vmem_limit_bytes=_VMEM_LIMIT_BYTES),
    )(x2d, m2d)


# ---------------------------------------------------------------------------
# Kernel 2: second pass -> per-feature sum((x*mask - mean)^2) over all rows
# (masked-but-real rows contribute (0 - mean)^2, padded rows contribute 0)
# ---------------------------------------------------------------------------
def _sqdev_kernel(x_ref, m_ref, mean_ref, var_ref, *, n_rows, block_rows):
    i = pl.program_id(0)

    @pl.when(i == 0)
    def _():
        var_ref[...] = jnp.zeros_like(var_ref)

    row = lax.broadcasted_iota(jnp.int32, (block_rows, 1), 0) + i * block_rows
    valid = row < n_rows
    data = jnp.where(valid, x_ref[...] * m_ref[...], 0.0)
    d = data - mean_ref[...]
    var_ref[...] += jnp.sum(jnp.where(valid, d * d, 0.0), axis=0, keepdims=True)


def _masked_sq_dev(x2d, m2d, mean_row):
    n, f = x2d.shape
    block_rows, grid = _pick_block_rows(n, (f + 1) * 4 * 2)
    kernel = functools.partial(_sqdev_kernel, n_rows=n, block_rows=block_rows)
    return pl.pallas_call(
        kernel,
        out_shape=jax.ShapeDtypeStruct((1, f), jnp.float32),
        grid_spec=pltpu.PrefetchScalarGridSpec(
            num_scalar_prefetch=0,
            grid=(grid,),
            in_specs=[pl.BlockSpec((block_rows, f), lambda i: (i, 0)),
                      pl.BlockSpec((block_rows, 1), lambda i: (i, 0)),
                      pl.BlockSpec((1, f), lambda i: (0, 0))],
            out_specs=pl.BlockSpec((1, f), lambda i: (0, 0))),
        compiler_params=pltpu.CompilerParams(
            dimension_semantics=("arbitrary",),
            vmem_limit_bytes=_VMEM_LIMIT_BYTES),
    )(x2d, m2d, mean_row)


# ---------------------------------------------------------------------------
# Kernel 3: elementwise affine  out = x * scale + bias  (per-feature params)
# ---------------------------------------------------------------------------
def _affine_kernel(x_ref, s_ref, b_ref, o_ref):
    o_ref[...] = x_ref[...] * s_ref[...] + b_ref[...]


def _affine(x2d, scale, bias):
    n, f = x2d.shape
    dtype = x2d.dtype

    if f % 128 != 0 and 128 % f == 0 and n % (128 // f) == 0:
        # Lane-dense fold: (N, F) -> (N*F/128, 128); lane j holds feature j % F,
        # so scale/bias are tiled 128//F times. Avoids masked partial stores.
        r = 128 // f
        fw = 128
        xw = x2d.reshape(n // r, fw)
        sw = jnp.tile(scale, r)
        bw = jnp.tile(bias, r)
    else:
        fw = f
        xw = x2d
        sw = scale
        bw = bias

    rows = xw.shape[0]
    itemsize = jnp.dtype(dtype).itemsize
    # in block + out block, each double-buffered.
    block_rows, grid = _pick_block_rows(rows, fw * itemsize * 4)

    out = pl.pallas_call(
        _affine_kernel,
        out_shape=jax.ShapeDtypeStruct((rows, fw), dtype),
        grid_spec=pltpu.PrefetchScalarGridSpec(
            num_scalar_prefetch=0,
            grid=(grid,),
            in_specs=[pl.BlockSpec((block_rows, fw), lambda i: (i, 0)),
                      pl.BlockSpec((1, fw), lambda i: (0, 0)),
                      pl.BlockSpec((1, fw), lambda i: (0, 0))],
            out_specs=pl.BlockSpec((block_rows, fw), lambda i: (i, 0))),
        compiler_params=pltpu.CompilerParams(
            dimension_semantics=("parallel",),
            vmem_limit_bytes=_VMEM_LIMIT_BYTES),
    )(xw, sw.reshape(1, fw).astype(dtype), bw.reshape(1, fw).astype(dtype))
    return out.reshape(n, f)


# ---------------------------------------------------------------------------
# ActNorm module (parameters held as plain JAX arrays, init deterministic)
# ---------------------------------------------------------------------------
class ActNorm:
    """ActNorm with data-dependent init.

    NOTE: initialize()/forward() mutate host-side Python state (the
    `_initialized` flag and parameter arrays), mirroring the PyTorch buffer
    semantics. Run the data-dependent init eagerly (outside jit); after that
    forward()/reverse() are pure affine maps over stored parameters.
    """

    def __init__(self, in_features):
        self.in_features = in_features
        self.log_scale = jnp.zeros((in_features,), jnp.float32)
        self.bias = jnp.zeros((in_features,), jnp.float32)
        self._initialized = False

    def initialize(self, x, mask):
        b, t, f = x.shape
        n = b * t
        x2d = x.reshape(n, f).astype(jnp.float32)
        m2d = mask.reshape(n, 1).astype(jnp.float32)

        sum_x, num = _masked_sum(x2d, m2d)          # (1,F), (1,1)
        num = num[0, 0]
        mean = sum_x[0] / num                       # (F,)
        # True second pass over (x*mask - mean)^2 -> matches torch exactly and
        # avoids sum-of-squares catastrophic cancellation.
        sq_dev = _masked_sq_dev(x2d, m2d, mean.reshape(1, f))[0]
        vars_ = sq_dev / num
        inv_std = 1.0 / (jnp.sqrt(vars_) + 1e-6)
        self.bias = -mean
        self.log_scale = jnp.log(inv_std)
        self._initialized = True

    def forward(self, x, mask):
        if not self._initialized:
            self.initialize(x, mask)
        b, t, f = x.shape
        x2d = x.reshape(b * t, f)
        out2d = _affine(x2d, jnp.exp(self.log_scale), self.bias)
        return out2d.reshape(b, t, f)

    def reverse(self, y, mask=None):
        b, t, f = y.shape
        y2d = y.reshape(b * t, f)
        inv = 1.0 / (jnp.exp(self.log_scale) + 1e-6)
        out2d = _affine(y2d, inv, -self.bias * inv)
        return out2d.reshape(b, t, f)

    def __call__(self, x, mask):
        return self.forward(x, mask)


# ---------------------------------------------------------------------------
def _reference_forward(x, mask):
    """Pure-JAX replica of the PyTorch semantics for a fresh (uninitialized) module."""
    num = jnp.sum(mask)
    data = x * mask[..., None]
    mean = jnp.sum(data, axis=(0, 1)) / num
    vars_ = jnp.sum((data - mean) ** 2, axis=(0, 1)) / num
    inv_std = 1.0 / (jnp.sqrt(vars_) + 1e-6)
    bias = -mean
    log_scale = jnp.log(inv_std)
    return x * jnp.exp(log_scale) + bias


if __name__ == "__main__":
    key = jax.random.PRNGKey(0)

    # Case 1: F=32 -> exercises the lane-dense folded affine path.
    B, T, F = 2, 8, 32
    kx, km, key = jax.random.split(key, 3)
    x = jax.random.normal(kx, (B, T, F), dtype=jnp.float32) * 2.0 + 0.5
    mask = (jax.random.uniform(km, (B, T)) > 0.3).astype(jnp.float32)
    mask = mask.at[0, 0].set(1.0)  # at least one unmasked position

    layer = ActNorm(F)
    out = jax.block_until_ready(layer(x, mask))
    ref = _reference_forward(x, mask)
    assert out.shape == (B, T, F)
    assert jnp.allclose(out, ref, atol=1e-4, rtol=1e-4), "case 1 mismatch vs reference"

    # Case 2: odd N and F (no folding, non-multiple-of-8 rows) -> fallback path.
    B2, T2, F2 = 3, 5, 48
    kx2, km2, key = jax.random.split(key, 3)
    x2 = jax.random.normal(kx2, (B2, T2, F2), dtype=jnp.float32) * 0.7 - 1.3
    mask2 = (jax.random.uniform(km2, (B2, T2)) > 0.4).astype(jnp.float32)
    mask2 = mask2.at[0, 0].set(1.0)

    layer2 = ActNorm(F2)
    out2 = jax.block_until_ready(layer2(x2, mask2))
    ref2 = _reference_forward(x2, mask2)
    assert out2.shape == (B2, T2, F2)
    assert jnp.allclose(out2, ref2, atol=1e-4, rtol=1e-4), "case 2 mismatch vs reference"

    print("KERNEL_OK")
</pallas_src>

<mosaic_0001>
module attributes {stable_mosaic.version = 11 : i64} {
  func.func @_sum_kernel(%arg0: i32, %arg1: memref<16x32xf32, #tpu.memory_space<vmem>>, %arg2: memref<16x1xf32, #tpu.memory_space<vmem>>, %arg3: memref<1x32xf32, #tpu.memory_space<vmem>>, %arg4: memref<1x1xf32, #tpu.memory_space<vmem>>) attributes {dimension_semantics = [#tpu.dimension_semantics<arbitrary>], iteration_bounds = array<i64: 1>, scalar_prefetch = 0 : i64, scratch_operands = 0 : i64, tpu.core_type = #tpu.core_type<tc>, window_params = [{transform_indices = @transform_0, window_bounds = array<i64: 16, 32>}, {transform_indices = @transform_1, window_bounds = array<i64: 16, 1>}, {pipeline_mode = #tpu.pipeline_mode<synchronous>, transform_indices = @transform_2, window_bounds = array<i64: 1, 32>}, {pipeline_mode = #tpu.pipeline_mode<synchronous>, transform_indices = @transform_3, window_bounds = array<i64: 1, 1>}]} {
    %c0_i32 = arith.constant 0 : i32
    %0 = arith.cmpi eq, %arg0, %c0_i32 : i32
    %1 = arith.extui %0 : i1 to i32
    %c0_i32_0 = arith.constant 0 : i32
    %2 = arith.cmpi ne, %1, %c0_i32_0 : i32
    scf.if %2 {
      %cst_18 = arith.constant 0.000000e+00 : f32
      %30 = vector.broadcast %cst_18 : f32 to vector<1x32xf32>
      %c0_19 = arith.constant 0 : index
      %c0_20 = arith.constant 0 : index
      %31 = vector.load %arg3[%c0_19, %c0_20] : memref<1x32xf32, #tpu.memory_space<vmem>>, vector<1x32xf32>
      tpu.vector_store %arg3[%c0_19, %c0_20], %30 {strides = array<i32>} : memref<1x32xf32, #tpu.memory_space<vmem>>, vector<1x32xf32>,
      %cst_21 = arith.constant 0.000000e+00 : f32
      %32 = vector.broadcast %cst_21 : f32 to vector<1x1xf32>
      %c0_22 = arith.constant 0 : index
      %c0_23 = arith.constant 0 : index
      %33 = vector.load %arg4[%c0_22, %c0_23] : memref<1x1xf32, #tpu.memory_space<vmem>>, vector<1x1xf32>
      tpu.vector_store %arg4[%c0_22, %c0_23], %32 {strides = array<i32>} : memref<1x1xf32, #tpu.memory_space<vmem>>, vector<1x1xf32>,
    } else {
    }
    %3 = tpu.iota {dimensions = array<i32: 0>} : vector<16x1xi32>
    %c16_i32 = arith.constant 16 : i32
    %4 = arith.muli %arg0, %c16_i32 : i32
    %5 = vector.broadcast %4 : i32 to vector<16x1xi32>
    %6 = arith.addi %3, %5 : vector<16x1xi32>
    %c16_i32_1 = arith.constant 16 : i32
    %7 = vector.broadcast %c16_i32_1 : i32 to vector<16x1xi32>
    %8 = arith.cmpi slt, %6, %7 : vector<16x1xi32>
    %c0 = arith.constant 0 : index
    %c0_2 = arith.constant 0 : index
    %9 = vector.load %arg1[%c0, %c0_2] : memref<16x32xf32, #tpu.memory_space<vmem>>, vector<16x32xf32>
    %c0_3 = arith.constant 0 : index
    %c0_4 = arith.constant 0 : index
    %10 = vector.load %arg2[%c0_3, %c0_4] : memref<16x1xf32, #tpu.memory_space<vmem>>, vector<16x1xf32>
    %11 = vector.broadcast %10 : vector<16x1xf32> to vector<16x32xf32>
    %12 = arith.mulf %9, %11 : vector<16x32xf32>
    %cst = arith.constant 0.000000e+00 : f32
    %13 = vector.shape_cast %8 : vector<16x1xi1> to vector<16x1xi1>
    %14 = vector.broadcast %13 : vector<16x1xi1> to vector<16x32xi1>
    %15 = vector.broadcast %cst : f32 to vector<16x32xf32>
    %16 = arith.select %14, %12, %15 : vector<16x32xi1>, vector<16x32xf32>
    %c0_5 = arith.constant 0 : index
    %c0_6 = arith.constant 0 : index
    %17 = vector.load %arg2[%c0_5, %c0_6] : memref<16x1xf32, #tpu.memory_space<vmem>>, vector<16x1xf32>
    %cst_7 = arith.constant 0.000000e+00 : f32
    %18 = vector.broadcast %cst_7 : f32 to vector<16x1xf32>
    %19 = arith.select %8, %17, %18 : vector<16x1xi1>, vector<16x1xf32>
    %c0_8 = arith.constant 0 : index
    %c0_9 = arith.constant 0 : index
    %20 = vector.load %arg3[%c0_8, %c0_9] : memref<1x32xf32, #tpu.memory_space<vmem>>, vector<1x32xf32>
    %cst_10 = arith.constant dense<0.000000e+00> : vector<32xf32>
    %21 = vector.multi_reduction <add>, %16, %cst_10 [0] : vector<16x32xf32> to vector<32xf32>
    %22 = vector.shape_cast %21 : vector<32xf32> to vector<1x32xf32>
    %23 = arith.addf %20, %22 : vector<1x32xf32>
    %c0_11 = arith.constant 0 : index
    %c0_12 = arith.constant 0 : index
    %24 = vector.load %arg3[%c0_11, %c0_12] : memref<1x32xf32, #tpu.memory_space<vmem>>, vector<1x32xf32>
    tpu.vector_store %arg3[%c0_11, %c0_12], %23 {strides = array<i32>} : memref<1x32xf32, #tpu.memory_space<vmem>>, vector<1x32xf32>,
    %c0_13 = arith.constant 0 : index
    %c0_14 = arith.constant 0 : index
    %25 = vector.load %arg4[%c0_13, %c0_14] : memref<1x1xf32, #tpu.memory_space<vmem>>, vector<1x1xf32>
    %cst_15 = arith.constant dense<0.000000e+00> : vector<1xf32>
    %26 = vector.multi_reduction <add>, %19, %cst_15 [0] : vector<16x1xf32> to vector<1xf32>
    %27 = vector.shape_cast %26 : vector<1xf32> to vector<1x1xf32>
    %28 = arith.addf %25, %27 : vector<1x1xf32>
    %c0_16 = arith.constant 0 : index
    %c0_17 = arith.constant 0 : index
    %29 = vector.load %arg4[%c0_16, %c0_17] : memref<1x1xf32, #tpu.memory_space<vmem>>, vector<1x1xf32>
    tpu.vector_store %arg4[%c0_16, %c0_17], %28 {strides = array<i32>} : memref<1x1xf32, #tpu.memory_space<vmem>>, vector<1x1xf32>,
    return
  }
  func.func @transform_0(%arg0: i32) -> (i32, i32) {
    %c0_i32 = arith.constant 0 : i32
    %c0_i32_0 = arith.constant 0 : i32
    return %arg0, %c0_i32 : i32, i32
  }
  func.func @transform_1(%arg0: i32) -> (i32, i32) {
    %c0_i32 = arith.constant 0 : i32
    %c0_i32_0 = arith.constant 0 : i32
    return %arg0, %c0_i32 : i32, i32
  }
  func.func @transform_2(%arg0: i32) -> (i32, i32) {
    %c0_i32 = arith.constant 0 : i32
    %c0_i32_0 = arith.constant 0 : i32
    %c0_i32_1 = arith.constant 0 : i32
    return %c0_i32, %c0_i32_0 : i32, i32
  }
  func.func @transform_3(%arg0: i32) -> (i32, i32) {
    %c0_i32 = arith.constant 0 : i32
    %c0_i32_0 = arith.constant 0 : i32
    %c0_i32_1 = arith.constant 0 : i32
    return %c0_i32, %c0_i32_0 : i32, i32
  }
}

</mosaic_0001>

<llo_original>
// kernel: tpu_custom_call.1
$region0: #{tpu_custom_call.1}
  #allocation0 [shape = 'u32[]', space=smem, size = 0x4, offset = 0x4, fixed_abs, tag = 'smem constant byte address 0x4 - core index']
  #allocation1 [shape = 'u32[144,128]{1,0:T(1,128)}', space=vmem, size = 0x12000, scoped, tag = 'internal scratch']
  %s0 = inlined_call_operand.vmem [shape: f32[16,32], index: 0, kind: input, shape index: {}]
  %s1 = inlined_call_operand.vmem [shape: f32[16,1], index: 1, kind: input, shape index: {}]
  %s2 = inlined_call_operand.hbm [shape: f32[1,32], index: 2, kind: output, shape index: {0}]
  %s3 = inlined_call_operand.hbm [shape: f32[1,1], index: 3, kind: output, shape index: {1}]
  %4 = xla_tuple %s2, %s3
  %s5 = sld [smem:[#allocation0]]
  $region30: #{tpu_custom_call.1} parent=0
    _
  %s7 = ssub.s32 1, %s5
  %s8 = scalar_select 0, %s7, %s5
  $region1: #{tpu_custom_call.1} parent=0
    #allocation2 [shape = 'u8[512]{0}', space=vmem, size = 0x400, scoped, tag = 'output window, operand 0, single buffered']
    #allocation3 [shape = 's32[1]{0}', space=sflag, size = 0x4, scoped, tag = 'scoped memory for tpu_custom_call.1']
    #allocation4 [shape = 'u8[512]{0}', space=vmem, size = 0x400, scoped, tag = 'output window, operand 1, single buffered']
    #allocation5 [shape = 's32[1]{0}', space=sflag, size = 0x4, scoped, tag = 'scoped memory for tpu_custom_call.1']
    %9 = vsyncpa [#allocation3], 0
    %10 = vsyncpa [#allocation5], 0
    // Predicated region
    $region2: #{tpu_custom_call.1} parent=1 // pred_check
      _
    $region3: #{tpu_custom_call.1} parent=1 // pred_check_branch
      %12 = sbr.rel (0) target = $region5
    $region4: #{tpu_custom_call.1} parent=1 // pred_region
      _
    $region5: #{tpu_custom_call.1} parent=1 // pred_fallthru
      _
    // Predicated region
    $region6: #{tpu_custom_call.1} parent=1 // pred_check
      _
    $region7: #{tpu_custom_call.1} parent=1 // pred_check_branch
      %14 = sbr.rel (0) target = $region9
    $region8: #{tpu_custom_call.1} parent=1 // pred_region
      _
    $region9: #{tpu_custom_call.1} parent=1 // pred_fallthru
      _
    %p15 = scmp.eq.s32.totalorder 0, 0
    // Predicated region
    $region10: #{tpu_custom_call.1} parent=1 // pred_check
      %p16 = pneg %p15
    $region11: #{tpu_custom_call.1} parent=1 // pred_check_branch
      %18 = sbr.rel (%p16) target = $region13
    $region12: #{tpu_custom_call.1} parent=1 // pred_region
      %vm19 = vcmask 253952
      %20 = vst.msk [vmem:[#allocation2] sm:$0x1] %vm19, 0.0
      %vm21 = vcmask 0
      %22 = vst.msk [vmem:[#allocation4] sm:$0x1] %vm21, 0.0
    $region13: #{tpu_custom_call.1} parent=1 // pred_fallthru
      _
    %v23 = vlaneseq
    %v24 = vshrl.u32 %v23, 7
    %v25 = vadd.s32 %v24, 8
    %s26 = smul.u32 0, 16
    %v27 = vstv %s26
    %v28 = vadd.s32 %v24, %v27
    %v29 = vadd.s32 %v25, %v27
    %vm30 = vcmp.lt.s32.totalorder %v28, 16
    %vm31 = vcmp.lt.s32.totalorder %v29, 16
    %v32 = vld [vmem:[%s0] sm:$0xff]
    %v33 = vld [vmem:[%s0 + $0x8] sm:$0xff]
    %v34 = vld [vmem:[%s1] sm:$0xff]
    %v35 = vld [vmem:[%s1 + $0x8] sm:$0xff]
    %37 = vset.pattern.permute.xlu0 0
    %38 = vperm.xlu0 %37, %v34
    %v39 = vpop.permute.xlu0 %38
    %42 = vset.pattern.permute.xlu0 0
    %43 = vperm.xlu0 %42, %v35
    %v44 = vpop.permute.xlu0 %43
    %v46 = vmul.f32 %v32, %v39
    %v47 = vmul.f32 %v33, %v44
    %v48 = vsel %vm30, 1, 0
    %v49 = vsel %vm31, 1, 0
    %vm50 = vcmp.eq.s32.totalorder %v48, 1
    %vm51 = vcmp.eq.s32.totalorder %v49, 1
    %v52 = vsel %vm50, %v46, 0.0
    %v53 = vsel %vm51, %v47, 0.0
    %v54 = vsel %vm30, %v34, 0.0
    %v55 = vsel %vm31, %v35, 0.0
    %v56 = vld [vmem:[#allocation2] sm:$0x1]
    %vm57 = vcmask 261120
    %v58 = vsel %vm57, %v52, 0.0
    %v59 = vsel %vm57, %v53, 0.0
    %v60 = vadd.f32 %v58, %v59
    %v61 = vrot.slane %v60, 4
    %v62 = vadd.f32 %v60, %v61
    %v63 = vrot.slane %v62, 2
    %v64 = vadd.f32 %v62, %v63
    %v65 = vrot.slane %v64, 1
    %v66 = vadd.f32 %v64, %v65
    %v67 = vadd.f32 %v56, %v66
    %vm68 = vcmask 253952
    %69 = vst.msk [vmem:[#allocation2] sm:$0x1] %vm68, %v67
    %v70 = vld [vmem:[#allocation4] sm:$0x1]
    %vm71 = vcmask 7168
    %v72 = vsel %vm71, %v54, 0.0
    %v73 = vsel %vm71, %v55, 0.0
    %v74 = vadd.f32 %v72, %v73
    %v75 = vrot.slane %v74, 4
    %v76 = vadd.f32 %v74, %v75
    %v77 = vrot.slane %v76, 2
    %v78 = vadd.f32 %v76, %v77
    %v79 = vrot.slane %v78, 1
    %v80 = vadd.f32 %v78, %v79
    %v81 = vadd.f32 %v70, %v80
    %vm82 = vcmask 0
    %83 = vst.msk [vmem:[#allocation4] sm:$0x1] %vm82, %v81
    // Predicated region
    $region14: #{tpu_custom_call.1} parent=1 // pred_check
      _
    $region15: #{tpu_custom_call.1} parent=1 // pred_check_branch
      %85 = sbr.rel (0) target = $region17
    $region16: #{tpu_custom_call.1} parent=1 // pred_region
      %s87 = ssub.s32 16, 16
      %88 = vsyncadd [#allocation3], %s87
      %s90 = sshll.u32 [#allocation2], 4
      %s91 = int_to_ptr.vmem [resolvable:$true] %s90
      %93 = dma.vmem_to_hbm [thread:$0]  %s91, 16, %s2, [#allocation3]
    $region17: #{tpu_custom_call.1} parent=1 // pred_fallthru
      _
    // Predicated region
    $region18: #{tpu_custom_call.1} parent=1 // pred_check
      _
    $region19: #{tpu_custom_call.1} parent=1 // pred_check_branch
      %95 = sbr.rel (0) target = $region21
    $region20: #{tpu_custom_call.1} parent=1 // pred_region
      %s97 = ssub.s32 16, 16
      %98 = vsyncadd [#allocation5], %s97
      %s100 = sshll.u32 [#allocation4], 4
      %s101 = int_to_ptr.vmem [resolvable:$true] %s100
      %103 = dma.vmem_to_hbm [thread:$0]  %s101, 16, %s3, [#allocation5]
    $region21: #{tpu_custom_call.1} parent=1 // pred_fallthru
      _
    // Predicated region
    $region22: #{tpu_custom_call.1} parent=1 // pred_check
      _
    $region23: #{tpu_custom_call.1} parent=1 // pred_check_branch
      %105 = sbr.rel (0) target = $region25
    $region24: #{tpu_custom_call.1} parent=1 // pred_region
      %106 = dma.done [#allocation3], 16
    $region25: #{tpu_custom_call.1} parent=1 // pred_fallthru
      _
    // Predicated region
    $region26: #{tpu_custom_call.1} parent=1 // pred_check
      _
    $region27: #{tpu_custom_call.1} parent=1 // pred_check_branch
      %108 = sbr.rel (0) target = $region29
    $region28: #{tpu_custom_call.1} parent=1 // pred_region
      %109 = dma.done [#allocation5], 16
    $region29: #{tpu_custom_call.1} parent=1 // pred_fallthru
      _
    %110 = vsyncpa [#allocation3], 1
    %111 = vsyncpa [#allocation5], 1

</llo_original>
